<compile_context>
chip_gen: v5e
topology: v5e:2x2
jax: 0.10.0
libtpu: 0.0.40
codegen_flags: <defaults>
</compile_context>

<pallas_src>
import jax
import jax.numpy as jnp
from jax import lax
from jax.experimental import pallas as pl
from jax.experimental.pallas import tpu as pltpu


_LANES = 128
_TARGET_TILE_ELEMS = 1 << 20       # ~1M elements / input tile (4 MiB f32)
_MAX_R_TILE = 64                   # rows per block (keeps accumulators small)
_DESIRED_PARALLEL_TILES = 8        # megacore load-balance target (v7x)


def _round_up(x, m):
    return ((x + m - 1) // m) * m


def _sublane_align(itemsize):
    # Sub-32-bit dtypes pack along sublanes; align the sublane block dim.
    if itemsize >= 4:
        return 8
    if itemsize == 2:
        return 16
    return 32


def _pick_g_tile(G, g_budget, align):
    """Spatial-group tile (second-minor dim of the 3D block)."""
    if G <= g_budget:
        return G, False                                # whole extent per step
    budget = max(align, (g_budget // align) * align)
    divisor = 0
    for cand in range(budget, 0, -align):              # largest aligned divisor
        if G % cand == 0:
            divisor = cand
            break
    if divisor >= max(align, budget // 2):
        return divisor, False                          # exact -> no tail mask
    return budget, True                                # ragged -> mask in-kernel


def _make_dice_sums_kernel(g_tile, total_groups, steps_per_chunk, needs_mask):
    def kernel(m1_ref, m2_ref, inter_ref, s1_ref, s2_ref):
        s_idx = pl.program_id(2)

        @pl.when(s_idx == 0)
        def _():
            inter_ref[...] = jnp.zeros_like(inter_ref)
            s1_ref[...] = jnp.zeros_like(s1_ref)
            s2_ref[...] = jnp.zeros_like(s2_ref)

        a = m1_ref[...].astype(jnp.float32)            # (r_tile, g_tile, 128)
        b = m2_ref[...].astype(jnp.float32)

        if needs_mask:
            # Zero out spatial groups past the end of the array (last block
            # of the last chunk only); generated only when the tile does not
            # divide the group count.
            gsb = pl.program_id(0) * steps_per_chunk + s_idx
            n_valid = total_groups - gsb * g_tile
            g_ids = lax.broadcasted_iota(jnp.int32, (1, g_tile, 1), 1)
            mask = g_ids < n_valid
            a = jnp.where(mask, a, 0.0)
            b = jnp.where(mask, b, 0.0)

        # Per-lane partial sums: reduce only the sublane (group) axis; the
        # 128-lane reduce happens once, in the wrapper, on a tiny array.
        inter_ref[...] += jnp.sum(a * b, axis=1)
        s1_ref[...] += jnp.sum(a, axis=1)
        s2_ref[...] += jnp.sum(b, axis=1)

    return kernel


def dice_loss(logits, targets, n_classes):
    """Equivalent of PyTorch DiceLoss(n_classes)(logits, targets). Scalar out."""
    assert logits.shape == targets.shape
    num = logits.shape[0]
    smooth = 1.0

    R = num * n_classes
    m1 = logits.reshape(R, -1)
    m2 = targets.reshape(R, -1)
    S = m1.shape[1]

    # ---- spatial view: (R, S) -> (R, G, 128); free reshape when 128 | S ----
    if S % _LANES != 0:
        # TODO(synk): rare ragged-spatial case pays one pad copy; a 2D
        # lane-masked fallback kernel would keep HBM traffic at 2*R*S exactly.
        pad = _round_up(S, _LANES) - S
        m1 = jnp.pad(m1, ((0, 0), (0, pad)))
        m2 = jnp.pad(m2, ((0, 0), (0, pad)))
        S = S + pad
    G = S // _LANES
    m1 = m1.reshape(R, G, _LANES)
    m2 = m2.reshape(R, G, _LANES)

    itemsize = max(jnp.dtype(m1.dtype).itemsize, jnp.dtype(m2.dtype).itemsize)
    g_align = _sublane_align(itemsize)

    # ---- tile sizing (trace-time Python ints) ------------------------------
    if R <= _MAX_R_TILE:
        r_tile = R                      # exact: no row tail at all
    else:
        # Grow rows beyond 64 only when S is small (keeps tiles near target).
        r_for_target = max(_MAX_R_TILE,
                           (_TARGET_TILE_ELEMS // (G * _LANES)) // 8 * 8)
        r_tile = min(_round_up(R, 8), r_for_target, 1024)
    n_r = pl.cdiv(R, r_tile)
    R_out = n_r * r_tile

    g_budget = max(1, _TARGET_TILE_ELEMS // (r_tile * _LANES))
    g_tile, needs_mask = _pick_g_tile(G, g_budget, g_align)
    n_s_total = pl.cdiv(G, g_tile)

    # ---- megacore: ensure enough tiles on the parallel axes (v7x) ----------
    if n_r >= _DESIRED_PARALLEL_TILES or n_s_total == 1:
        n_chunks = 1
    else:
        needed = pl.cdiv(_DESIRED_PARALLEL_TILES, n_r)
        if needed >= n_s_total:
            n_chunks = n_s_total
        else:
            n_chunks = n_s_total
            for d in range(needed, n_s_total + 1):
                if n_s_total % d == 0:
                    n_chunks = d
                    break
    steps_per_chunk = n_s_total // n_chunks

    grid = (n_chunks, n_r, steps_per_chunk)

    in_spec = pl.BlockSpec(
        (r_tile, g_tile, _LANES),
        lambda c, r, s: (r, c * steps_per_chunk + s, 0),
    )
    out_spec = pl.BlockSpec((None, r_tile, _LANES), lambda c, r, s: (c, r, 0))
    out_shape = jax.ShapeDtypeStruct((n_chunks, R_out, _LANES), jnp.float32)

    # ---- VMEM budget: 2 inputs x 2 pipeline buffers x tile + f32 temps -----
    tile_elems = r_tile * g_tile * _LANES
    in_bytes = 2 * 2 * tile_elems * itemsize
    tmp_bytes = 3 * tile_elems * 4          # in-kernel f32 casts + product
    out_bytes = 3 * 2 * r_tile * _LANES * 4
    vmem_limit = int(min(60 * 2**20,
                         max(32 * 2**20,
                             1.3 * (in_bytes + tmp_bytes + out_bytes))))

    cost = pl.CostEstimate(
        flops=4 * R * G * _LANES,
        transcendentals=0,
        bytes_accessed=2 * R * G * _LANES * itemsize
        + 3 * n_chunks * R_out * _LANES * 4,
    )

    kernel = _make_dice_sums_kernel(g_tile, G, steps_per_chunk, needs_mask)

    inter, s1, s2 = pl.pallas_call(
        kernel,
        out_shape=(out_shape, out_shape, out_shape),
        grid_spec=pltpu.PrefetchScalarGridSpec(
            num_scalar_prefetch=0,
            grid=grid,
            in_specs=[in_spec, in_spec],
            out_specs=(out_spec, out_spec, out_spec),
        ),
        compiler_params=pltpu.CompilerParams(
            # chunk and row axes are independent work (megacore-shardable on
            # v7x); the spatial reduction axis is last / "arbitrary" so the
            # wide accumulators stay resident across it.
            dimension_semantics=("parallel", "parallel", "arbitrary"),
            vmem_limit_bytes=vmem_limit,
        ),
        cost_estimate=cost,
    )(m1, m2)

    # ---- tiny finalize in plain JAX (N*C*128-sized arrays) ------------------
    inter = inter.sum(axis=(0, 2))[:R].reshape(num, n_classes)
    s1 = s1.sum(axis=(0, 2))[:R].reshape(num, n_classes)
    s2 = s2.sum(axis=(0, 2))[:R].reshape(num, n_classes)
    score = (smooth + 2.0 * inter) / (smooth + s1 + s2)
    per_image = 1.0 - jnp.sum(score, axis=1) / float(n_classes)
    return jnp.sum(per_image) / float(num)


def _reference_dice_loss(logits, targets, n_classes):
    # Pure-JAX reference mirroring the PyTorch forward exactly.
    num = logits.shape[0]
    smooth = 1.0
    m1 = logits.reshape(num, n_classes, -1).astype(jnp.float32)
    m2 = targets.reshape(num, n_classes, -1).astype(jnp.float32)
    intersection = m1 * m2
    score = (smooth + 2.0 * intersection.sum(2)) / (smooth + m1.sum(2) + m2.sum(2))
    score = 1.0 - score.sum(1) / n_classes
    return score.sum() / num


if __name__ == "__main__":
    key = jax.random.PRNGKey(0)
    k1, k2 = jax.random.split(key)

    N, C, H, W = 2, 4, 16, 16
    logits = jax.random.uniform(k1, (N, C, H, W), dtype=jnp.float32)
    # synthetic "targets": binary masks per class
    targets = (jax.random.uniform(k2, (N, C, H, W), dtype=jnp.float32) > 0.5).astype(
        jnp.float32
    )

    loss = dice_loss(logits, targets, n_classes=C)
    jax.block_until_ready(loss)

    ref = _reference_dice_loss(logits, targets, n_classes=C)
    assert jnp.allclose(loss, ref, atol=1e-5, rtol=1e-5), (loss, ref)

    print("KERNEL_OK")
</pallas_src>

<mosaic_0001>
module attributes {stable_mosaic.version = 11 : i64} {
  func.func @kernel(%arg0: i32, %arg1: i32, %arg2: i32, %arg3: memref<8x2x128xf32, #tpu.memory_space<vmem>>, %arg4: memref<8x2x128xf32, #tpu.memory_space<vmem>>, %arg5: memref<1x8x128xf32, #tpu.memory_space<vmem>>, %arg6: memref<1x8x128xf32, #tpu.memory_space<vmem>>, %arg7: memref<1x8x128xf32, #tpu.memory_space<vmem>>) attributes {dimension_semantics = [#tpu.dimension_semantics<parallel>, #tpu.dimension_semantics<parallel>, #tpu.dimension_semantics<arbitrary>], iteration_bounds = array<i64: 1, 1, 1>, scalar_prefetch = 0 : i64, scratch_operands = 0 : i64, tpu.core_type = #tpu.core_type<tc>, window_params = [{transform_indices = @transform_0, window_bounds = array<i64: 8, 2, 128>}, {transform_indices = @transform_1, window_bounds = array<i64: 8, 2, 128>}, {transform_indices = @transform_2, window_bounds = array<i64: 1, 8, 128>}, {transform_indices = @transform_3, window_bounds = array<i64: 1, 8, 128>}, {transform_indices = @transform_4, window_bounds = array<i64: 1, 8, 128>}]} {
    %c0_i32 = arith.constant 0 : i32
    %0 = arith.cmpi eq, %arg2, %c0_i32 : i32
    %1 = arith.extui %0 : i1 to i32
    %c0_i32_0 = arith.constant 0 : i32
    %2 = arith.cmpi ne, %1, %c0_i32_0 : i32
    scf.if %2 {
      %cst_26 = arith.constant 0.000000e+00 : f32
      %27 = vector.broadcast %cst_26 : f32 to vector<8x128xf32>
      %c0_27 = arith.constant 0 : index
      %c0_28 = arith.constant 0 : index
      %c0_29 = arith.constant 0 : index
      %28 = vector.load %arg5[%c0_27, %c0_28, %c0_29] : memref<1x8x128xf32, #tpu.memory_space<vmem>>, vector<1x8x128xf32>
      %29 = vector.shape_cast %28 : vector<1x8x128xf32> to vector<8x128xf32>
      %30 = vector.shape_cast %27 : vector<8x128xf32> to vector<1x8x128xf32>
      tpu.vector_store %arg5[%c0_27, %c0_28, %c0_29], %30 {strides = array<i32>} : memref<1x8x128xf32, #tpu.memory_space<vmem>>, vector<1x8x128xf32>,
      %cst_30 = arith.constant 0.000000e+00 : f32
      %31 = vector.broadcast %cst_30 : f32 to vector<8x128xf32>
      %c0_31 = arith.constant 0 : index
      %c0_32 = arith.constant 0 : index
      %c0_33 = arith.constant 0 : index
      %32 = vector.load %arg6[%c0_31, %c0_32, %c0_33] : memref<1x8x128xf32, #tpu.memory_space<vmem>>, vector<1x8x128xf32>
      %33 = vector.shape_cast %32 : vector<1x8x128xf32> to vector<8x128xf32>
      %34 = vector.shape_cast %31 : vector<8x128xf32> to vector<1x8x128xf32>
      tpu.vector_store %arg6[%c0_31, %c0_32, %c0_33], %34 {strides = array<i32>} : memref<1x8x128xf32, #tpu.memory_space<vmem>>, vector<1x8x128xf32>,
      %cst_34 = arith.constant 0.000000e+00 : f32
      %35 = vector.broadcast %cst_34 : f32 to vector<8x128xf32>
      %c0_35 = arith.constant 0 : index
      %c0_36 = arith.constant 0 : index
      %c0_37 = arith.constant 0 : index
      %36 = vector.load %arg7[%c0_35, %c0_36, %c0_37] : memref<1x8x128xf32, #tpu.memory_space<vmem>>, vector<1x8x128xf32>
      %37 = vector.shape_cast %36 : vector<1x8x128xf32> to vector<8x128xf32>
      %38 = vector.shape_cast %35 : vector<8x128xf32> to vector<1x8x128xf32>
      tpu.vector_store %arg7[%c0_35, %c0_36, %c0_37], %38 {strides = array<i32>} : memref<1x8x128xf32, #tpu.memory_space<vmem>>, vector<1x8x128xf32>,
    } else {
    }
    %c0 = arith.constant 0 : index
    %c0_1 = arith.constant 0 : index
    %c0_2 = arith.constant 0 : index
    %3 = vector.load %arg3[%c0, %c0_1, %c0_2] : memref<8x2x128xf32, #tpu.memory_space<vmem>>, vector<8x2x128xf32>
    %c0_3 = arith.constant 0 : index
    %c0_4 = arith.constant 0 : index
    %c0_5 = arith.constant 0 : index
    %4 = vector.load %arg4[%c0_3, %c0_4, %c0_5] : memref<8x2x128xf32, #tpu.memory_space<vmem>>, vector<8x2x128xf32>
    %c0_6 = arith.constant 0 : index
    %c0_7 = arith.constant 0 : index
    %c0_8 = arith.constant 0 : index
    %5 = vector.load %arg5[%c0_6, %c0_7, %c0_8] : memref<1x8x128xf32, #tpu.memory_space<vmem>>, vector<1x8x128xf32>
    %6 = vector.shape_cast %5 : vector<1x8x128xf32> to vector<8x128xf32>
    %7 = arith.mulf %3, %4 : vector<8x2x128xf32>
    %cst = arith.constant dense<0.000000e+00> : vector<8x128xf32>
    %8 = vector.multi_reduction <add>, %7, %cst [1] : vector<8x2x128xf32> to vector<8x128xf32>
    %9 = arith.addf %6, %8 : vector<8x128xf32>
    %c0_9 = arith.constant 0 : index
    %c0_10 = arith.constant 0 : index
    %c0_11 = arith.constant 0 : index
    %10 = vector.load %arg5[%c0_9, %c0_10, %c0_11] : memref<1x8x128xf32, #tpu.memory_space<vmem>>, vector<1x8x128xf32>
    %11 = vector.shape_cast %10 : vector<1x8x128xf32> to vector<8x128xf32>
    %12 = vector.shape_cast %9 : vector<8x128xf32> to vector<1x8x128xf32>
    tpu.vector_store %arg5[%c0_9, %c0_10, %c0_11], %12 {strides = array<i32>} : memref<1x8x128xf32, #tpu.memory_space<vmem>>, vector<1x8x128xf32>,
    %c0_12 = arith.constant 0 : index
    %c0_13 = arith.constant 0 : index
    %c0_14 = arith.constant 0 : index
    %13 = vector.load %arg6[%c0_12, %c0_13, %c0_14] : memref<1x8x128xf32, #tpu.memory_space<vmem>>, vector<1x8x128xf32>
    %14 = vector.shape_cast %13 : vector<1x8x128xf32> to vector<8x128xf32>
    %cst_15 = arith.constant dense<0.000000e+00> : vector<8x128xf32>
    %15 = vector.multi_reduction <add>, %3, %cst_15 [1] : vector<8x2x128xf32> to vector<8x128xf32>
    %16 = arith.addf %14, %15 : vector<8x128xf32>
    %c0_16 = arith.constant 0 : index
    %c0_17 = arith.constant 0 : index
    %c0_18 = arith.constant 0 : index
    %17 = vector.load %arg6[%c0_16, %c0_17, %c0_18] : memref<1x8x128xf32, #tpu.memory_space<vmem>>, vector<1x8x128xf32>
    %18 = vector.shape_cast %17 : vector<1x8x128xf32> to vector<8x128xf32>
    %19 = vector.shape_cast %16 : vector<8x128xf32> to vector<1x8x128xf32>
    tpu.vector_store %arg6[%c0_16, %c0_17, %c0_18], %19 {strides = array<i32>} : memref<1x8x128xf32, #tpu.memory_space<vmem>>, vector<1x8x128xf32>,
    %c0_19 = arith.constant 0 : index
    %c0_20 = arith.constant 0 : index
    %c0_21 = arith.constant 0 : index
    %20 = vector.load %arg7[%c0_19, %c0_20, %c0_21] : memref<1x8x128xf32, #tpu.memory_space<vmem>>, vector<1x8x128xf32>
    %21 = vector.shape_cast %20 : vector<1x8x128xf32> to vector<8x128xf32>
    %cst_22 = arith.constant dense<0.000000e+00> : vector<8x128xf32>
    %22 = vector.multi_reduction <add>, %4, %cst_22 [1] : vector<8x2x128xf32> to vector<8x128xf32>
    %23 = arith.addf %21, %22 : vector<8x128xf32>
    %c0_23 = arith.constant 0 : index
    %c0_24 = arith.constant 0 : index
    %c0_25 = arith.constant 0 : index
    %24 = vector.load %arg7[%c0_23, %c0_24, %c0_25] : memref<1x8x128xf32, #tpu.memory_space<vmem>>, vector<1x8x128xf32>
    %25 = vector.shape_cast %24 : vector<1x8x128xf32> to vector<8x128xf32>
    %26 = vector.shape_cast %23 : vector<8x128xf32> to vector<1x8x128xf32>
    tpu.vector_store %arg7[%c0_23, %c0_24, %c0_25], %26 {strides = array<i32>} : memref<1x8x128xf32, #tpu.memory_space<vmem>>, vector<1x8x128xf32>,
    return
  }
  func.func @transform_0(%arg0: i32, %arg1: i32, %arg2: i32) -> (i32, i32, i32) {
    %c1_i32 = arith.constant 1 : i32
    %0 = arith.muli %arg0, %c1_i32 : i32
    %1 = arith.addi %0, %arg2 : i32
    %c0_i32 = arith.constant 0 : i32
    %c0_i32_0 = arith.constant 0 : i32
    return %arg1, %1, %c0_i32 : i32, i32, i32
  }
  func.func @transform_1(%arg0: i32, %arg1: i32, %arg2: i32) -> (i32, i32, i32) {
    %c1_i32 = arith.constant 1 : i32
    %0 = arith.muli %arg0, %c1_i32 : i32
    %1 = arith.addi %0, %arg2 : i32
    %c0_i32 = arith.constant 0 : i32
    %c0_i32_0 = arith.constant 0 : i32
    return %arg1, %1, %c0_i32 : i32, i32, i32
  }
  func.func @transform_2(%arg0: i32, %arg1: i32, %arg2: i32) -> (i32, i32, i32) {
    %c0_i32 = arith.constant 0 : i32
    %c0_i32_0 = arith.constant 0 : i32
    return %arg0, %arg1, %c0_i32 : i32, i32, i32
  }
  func.func @transform_3(%arg0: i32, %arg1: i32, %arg2: i32) -> (i32, i32, i32) {
    %c0_i32 = arith.constant 0 : i32
    %c0_i32_0 = arith.constant 0 : i32
    return %arg0, %arg1, %c0_i32 : i32, i32, i32
  }
  func.func @transform_4(%arg0: i32, %arg1: i32, %arg2: i32) -> (i32, i32, i32) {
    %c0_i32 = arith.constant 0 : i32
    %c0_i32_0 = arith.constant 0 : i32
    return %arg0, %arg1, %c0_i32 : i32, i32, i32
  }
}

</mosaic_0001>

<llo_original>
// kernel: tpu_custom_call.1
$region0: #{tpu_custom_call.1}
  #allocation0 [shape = 'u32[]', space=smem, size = 0x4, offset = 0x4, fixed_abs, tag = 'smem constant byte address 0x4 - core index']
  #allocation1 [shape = 'u32[72,128]{1,0:T(1,128)}', space=vmem, size = 0x9000, scoped, tag = 'internal scratch']
  %s0 = inlined_call_operand.hbm [shape: f32[8,2,128], index: 0, kind: input, shape index: {}]
  %s1 = inlined_call_operand.hbm [shape: f32[8,2,128], index: 1, kind: input, shape index: {}]
  %s2 = inlined_call_operand.hbm [shape: f32[1,8,128], index: 2, kind: output, shape index: {0}]
  %s3 = inlined_call_operand.hbm [shape: f32[1,8,128], index: 3, kind: output, shape index: {1}]
  %s4 = inlined_call_operand.hbm [shape: f32[1,8,128], index: 4, kind: output, shape index: {2}]
  %5 = xla_tuple %s2, %s3, %s4
  %s6 = sld [smem:[#allocation0]]
  $region46: #{tpu_custom_call.1} parent=0
    _
  %s8 = ssub.s32 1, %s6
  %s9 = scalar_select 0, %s8, %s6
  $region1: #{tpu_custom_call.1} parent=0
    #allocation2 [shape = 'u8[8192]{0}', space=vmem, size = 0x2000, scoped, tag = 'input window, operand 0, single buffered']
    #allocation3 [shape = 's32[1]{0}', space=sflag, size = 0x4, scoped, tag = 'scoped memory for tpu_custom_call.1']
    #allocation4 [shape = 's32[1]{0}', space=sflag, size = 0x4, scoped, tag = 'scoped memory for tpu_custom_call.1']
    #allocation5 [shape = 'u8[8192]{0}', space=vmem, size = 0x2000, scoped, tag = 'input window, operand 1, single buffered']
    #allocation6 [shape = 's32[1]{0}', space=sflag, size = 0x4, scoped, tag = 'scoped memory for tpu_custom_call.1']
    #allocation7 [shape = 'u8[4096]{0}', space=vmem, size = 0x1000, scoped, tag = 'output window, operand 0, single buffered']
    #allocation8 [shape = 'u8[4096]{0}', space=vmem, size = 0x1000, scoped, tag = 'output window, operand 1, single buffered']
    #allocation9 [shape = 's32[1]{0}', space=sflag, size = 0x4, scoped, tag = 'scoped memory for tpu_custom_call.1']
    #allocation10 [shape = 'u8[4096]{0}', space=vmem, size = 0x1000, scoped, tag = 'output window, operand 2, single buffered']
    %10 = vsyncpa [#allocation3], 0
    %11 = vsyncpa [#allocation6], 0
    %12 = vsyncpa [#allocation4], 0
    %13 = vsyncpa [#allocation9], 0
    // Predicated region
    $region2: #{tpu_custom_call.1} parent=1 // pred_check
      _
    $region3: #{tpu_custom_call.1} parent=1 // pred_check_branch
      %15 = sbr.rel (0) target = $region5
    $region4: #{tpu_custom_call.1} parent=1 // pred_region
      %s16 = sadd.s32 0, 0
      %18 = vsyncadd [#allocation3], 0
      %s19 = smul.addr %s16, 2
      %s20 = scalar_lea.hbm %s0, %s19
      %s21 = sshll.u32 %s20, 4
      %s22 = int_to_ptr.hbm [resolvable:$true] %s21
      %s23 = sshll.u32 [#allocation2], 4
      %s24 = int_to_ptr.vmem [resolvable:$true] %s23
      %29 = dma.hbm_to_vmem [thread:$0]  %s22, 256, %s24, [#allocation3], 32, 32, 2
    $region5: #{tpu_custom_call.1} parent=1 // pred_fallthru
      _
    // Predicated region
    $region6: #{tpu_custom_call.1} parent=1 // pred_check
      _
    $region7: #{tpu_custom_call.1} parent=1 // pred_check_branch
      %31 = sbr.rel (0) target = $region9
    $region8: #{tpu_custom_call.1} parent=1 // pred_region
      %s32 = sadd.s32 0, 0
      %34 = vsyncadd [#allocation6], 0
      %s35 = smul.addr %s32, 2
      %s36 = scalar_lea.hbm %s1, %s35
      %s37 = sshll.u32 %s36, 4
      %s38 = int_to_ptr.hbm [resolvable:$true] %s37
      %s39 = sshll.u32 [#allocation5], 4
      %s40 = int_to_ptr.vmem [resolvable:$true] %s39
      %45 = dma.hbm_to_vmem [thread:$0]  %s38, 256, %s40, [#allocation6], 32, 32, 2
    $region9: #{tpu_custom_call.1} parent=1 // pred_fallthru
      _
    // Predicated region
    $region10: #{tpu_custom_call.1} parent=1 // pred_check
      _
    $region11: #{tpu_custom_call.1} parent=1 // pred_check_branch
      %47 = sbr.rel (0) target = $region13
    $region12: #{tpu_custom_call.1} parent=1 // pred_region
      %49 = dma.done [#allocation3], 256
    $region13: #{tpu_custom_call.1} parent=1 // pred_fallthru
      _
    // Predicated region
    $region14: #{tpu_custom_call.1} parent=1 // pred_check
      _
    $region15: #{tpu_custom_call.1} parent=1 // pred_check_branch
      %51 = sbr.rel (0) target = $region17
    $region16: #{tpu_custom_call.1} parent=1 // pred_region
      %53 = dma.done [#allocation6], 256
    $region17: #{tpu_custom_call.1} parent=1 // pred_fallthru
      _
    %s54 = sadd.s32 0, 0
    %s55 = sadd.s32 0, 0
    %p56 = scmp.eq.s32.totalorder 0, 0
    // Predicated region
    $region18: #{tpu_custom_call.1} parent=1 // pred_check
      %p57 = pneg %p56
    $region19: #{tpu_custom_call.1} parent=1 // pred_check_branch
      %59 = sbr.rel (%p57) target = $region21
    $region20: #{tpu_custom_call.1} parent=1 // pred_region
      %60 = vst [vmem:[#allocation7] sm:$0xff] 0.0
      %61 = vst [vmem:[#allocation8] sm:$0xff] 0.0
      %62 = vst [vmem:[#allocation10] sm:$0xff] 0.0
    $region21: #{tpu_custom_call.1} parent=1 // pred_fallthru
      _
    %v63 = vld [vmem:[#allocation2] sm:$0x3]
    %v64 = vld [vmem:[#allocation2 + $0x2] sm:$0x3]
    %v65 = vld [vmem:[#allocation2 + $0x4] sm:$0x3]
    %v66 = vld [vmem:[#allocation2 + $0x6] sm:$0x3]
    %v67 = vld [vmem:[#allocation2 + $0x8] sm:$0x3]
    %v68 = vld [vmem:[#allocation2 + $0xa] sm:$0x3]
    %v69 = vld [vmem:[#allocation2 + $0xc] sm:$0x3]
    %v70 = vld [vmem:[#allocation2 + $0xe] sm:$0x3]
    %v71 = vld [vmem:[#allocation5] sm:$0x3]
    %v72 = vld [vmem:[#allocation5 + $0x2] sm:$0x3]
    %v73 = vld [vmem:[#allocation5 + $0x4] sm:$0x3]
    %v74 = vld [vmem:[#allocation5 + $0x6] sm:$0x3]
    %v75 = vld [vmem:[#allocation5 + $0x8] sm:$0x3]
    %v76 = vld [vmem:[#allocation5 + $0xa] sm:$0x3]
    %v77 = vld [vmem:[#allocation5 + $0xc] sm:$0x3]
    %v78 = vld [vmem:[#allocation5 + $0xe] sm:$0x3]
    %v79 = vld [vmem:[#allocation7] sm:$0xff]
    %v80 = vmul.f32 %v63, %v71
    %v81 = vmul.f32 %v64, %v72
    %v82 = vmul.f32 %v65, %v73
    %v83 = vmul.f32 %v66, %v74
    %v84 = vmul.f32 %v67, %v75
    %v85 = vmul.f32 %v68, %v76
    %v86 = vmul.f32 %v69, %v77
    %v87 = vmul.f32 %v70, %v78
    %vm88 = vcmask 1041408
    %v89 = vsel %vm88, %v80, 0.0
    %v90 = vrot.slane %v89, 4
    %v91 = vadd.f32 %v89, %v90
    %v92 = vrot.slane %v91, 2
    %v93 = vadd.f32 %v91, %v92
    %v94 = vrot.slane %v93, 1
    %v95 = vadd.f32 %v93, %v94
    %v96 = vsel %vm88, %v81, 0.0
    %v97 = vrot.slane %v96, 4
    %v98 = vadd.f32 %v96, %v97
    %v99 = vrot.slane %v98, 2
    %v100 = vadd.f32 %v98, %v99
    %v101 = vrot.slane %v100, 1
    %v102 = vadd.f32 %v100, %v101
    %v103 = vsel %vm88, %v82, 0.0
    %v104 = vrot.slane %v103, 4
    %v105 = vadd.f32 %v103, %v104
    %v106 = vrot.slane %v105, 2
    %v107 = vadd.f32 %v105, %v106
    %v108 = vrot.slane %v107, 1
    %v109 = vadd.f32 %v107, %v108
    %v110 = vsel %vm88, %v83, 0.0
    %v111 = vrot.slane %v110, 4
    %v112 = vadd.f32 %v110, %v111
    %v113 = vrot.slane %v112, 2
    %v114 = vadd.f32 %v112, %v113
    %v115 = vrot.slane %v114, 1
    %v116 = vadd.f32 %v114, %v115
    %v117 = vsel %vm88, %v84, 0.0
    %v118 = vrot.slane %v117, 4
    %v119 = vadd.f32 %v117, %v118
    %v120 = vrot.slane %v119, 2
    %v121 = vadd.f32 %v119, %v120
    %v122 = vrot.slane %v121, 1
    %v123 = vadd.f32 %v121, %v122
    %v124 = vsel %vm88, %v85, 0.0
    %v125 = vrot.slane %v124, 4
    %v126 = vadd.f32 %v124, %v125
    %v127 = vrot.slane %v126, 2
    %v128 = vadd.f32 %v126, %v127
    %v129 = vrot.slane %v128, 1
    %v130 = vadd.f32 %v128, %v129
    %v131 = vsel %vm88, %v86, 0.0
    %v132 = vrot.slane %v131, 4
    %v133 = vadd.f32 %v131, %v132
    %v134 = vrot.slane %v133, 2
    %v135 = vadd.f32 %v133, %v134
    %v136 = vrot.slane %v135, 1
    %v137 = vadd.f32 %v135, %v136
    %v138 = vsel %vm88, %v87, 0.0
    %v139 = vrot.slane %v138, 4
    %v140 = vadd.f32 %v138, %v139
    %v141 = vrot.slane %v140, 2
    %v142 = vadd.f32 %v140, %v141
    %v143 = vrot.slane %v142, 1
    %v144 = vadd.f32 %v142, %v143
    %vm153 = vcmask 1041409
    %v154 = vsel %vm153, %v102, %v95
    %vm155 = vcmask 1042434
    %v156 = vsel %vm155, %v109, %v154
    %vm157 = vcmask 1043459
    %v158 = vsel %vm157, %v116, %v156
    %vm159 = vcmask 1044484
    %v160 = vsel %vm159, %v123, %v158
    %vm161 = vcmask 1045509
    %v162 = vsel %vm161, %v130, %v160
    %vm163 = vcmask 1046534
    %v164 = vsel %vm163, %v137, %v162
    %vm165 = vcmask 1047559
    %v166 = vsel %vm165, %v144, %v164
    %v168 = vadd.f32 %v79, %v166
    %169 = vst [vmem:[#allocation7] sm:$0xff] %v168
    %v170 = vld [vmem:[#allocation8] sm:$0xff]
    %v171 = vsel %vm88, %v63, 0.0
    %v172 = vrot.slane %v171, 4
    %v173 = vadd.f32 %v171, %v172
    %v174 = vrot.slane %v173, 2
    %v175 = vadd.f32 %v173, %v174
    %v176 = vrot.slane %v175, 1
    %v177 = vadd.f32 %v175, %v176
    %v178 = vsel %vm88, %v64, 0.0
    %v179 = vrot.slane %v178, 4
    %v180 = vadd.f32 %v178, %v179
    %v181 = vrot.slane %v180, 2
    %v182 = vadd.f32 %v180, %v181
    %v183 = vrot.slane %v182, 1
    %v184 = vadd.f32 %v182, %v183
    %v185 = vsel %vm88, %v65, 0.0
    %v186 = vrot.slane %v185, 4
    %v187 = vadd.f32 %v185, %v186
    %v188 = vrot.slane %v187, 2
    %v189 = vadd.f32 %v187, %v188
    %v190 = vrot.slane %v189, 1
    %v191 = vadd.f32 %v189, %v190
    %v192 = vsel %vm88, %v66, 0.0
    %v193 = vrot.slane %v192, 4
    %v194 = vadd.f32 %v192, %v193
    %v195 = vrot.slane %v194, 2
    %v196 = vadd.f32 %v194, %v195
    %v197 = vrot.slane %v196, 1
    %v198 = vadd.f32 %v196, %v197
    %v199 = vsel %vm88, %v67, 0.0
    %v200 = vrot.slane %v199, 4
    %v201 = vadd.f32 %v199, %v200
    %v202 = vrot.slane %v201, 2
    %v203 = vadd.f32 %v201, %v202
    %v204 = vrot.slane %v203, 1
    %v205 = vadd.f32 %v203, %v204
    %v206 = vsel %vm88, %v68, 0.0
    %v207 = vrot.slane %v206, 4
    %v208 = vadd.f32 %v206, %v207
    %v209 = vrot.slane %v208, 2
    %v210 = vadd.f32 %v208, %v209
    %v211 = vrot.slane %v210, 1
    %v212 = vadd.f32 %v210, %v211
    %v213 = vsel %vm88, %v69, 0.0
    %v214 = vrot.slane %v213, 4
    %v215 = vadd.f32 %v213, %v214
    %v216 = vrot.slane %v215, 2
    %v217 = vadd.f32 %v215, %v216
    %v218 = vrot.slane %v217, 1
    %v219 = vadd.f32 %v217, %v218
    %v220 = vsel %vm88, %v70, 0.0
    %v221 = vrot.slane %v220, 4
    %v222 = vadd.f32 %v220, %v221
    %v223 = vrot.slane %v222, 2
    %v224 = vadd.f32 %v222, %v223
    %v225 = vrot.slane %v224, 1
    %v226 = vadd.f32 %v224, %v225
    %v235 = vsel %vm153, %v184, %v177
    %v236 = vsel %vm155, %v191, %v235
    %v237 = vsel %vm157, %v198, %v236
    %v238 = vsel %vm159, %v205, %v237
    %v239 = vsel %vm161, %v212, %v238
    %v240 = vsel %vm163, %v219, %v239
    %v241 = vsel %vm165, %v226, %v240
    %v243 = vadd.f32 %v170, %v241
    %244 = vst [vmem:[#allocation8] sm:$0xff] %v243
    %v245 = vld [vmem:[#allocation10] sm:$0xff]
    %v246 = vsel %vm88, %v71, 0.0
    %v247 = vrot.slane %v246, 4
    %v248 = vadd.f32 %v246, %v247
    %v249 = vrot.slane %v248, 2
    %v250 = vadd.f32 %v248, %v249
    %v251 = vrot.slane %v250, 1
    %v252 = vadd.f32 %v250, %v251
    %v253 = vsel %vm88, %v72, 0.0
    %v254 = vrot.slane %v253, 4
    %v255 = vadd.f32 %v253, %v254
    %v256 = vrot.slane %v255, 2
    %v257 = vadd.f32 %v255, %v256
    %v258 = vrot.slane %v257, 1
    %v259 = vadd.f32 %v257, %v258
    %v260 = vsel %vm88, %v73, 0.0
    %v261 = vrot.slane %v260, 4
    %v262 = vadd.f32 %v260, %v261
    %v263 = vrot.slane %v262, 2
    %v264 = vadd.f32 %v262, %v263
    %v265 = vrot.slane %v264, 1
    %v266 = vadd.f32 %v264, %v265
    %v267 = vsel %vm88, %v74, 0.0
    %v268 = vrot.slane %v267, 4
    %v269 = vadd.f32 %v267, %v268
    %v270 = vrot.slane %v269, 2
    %v271 = vadd.f32 %v269, %v270
    %v272 = vrot.slane %v271, 1
    %v273 = vadd.f32 %v271, %v272
    %v274 = vsel %vm88, %v75, 0.0
    %v275 = vrot.slane %v274, 4
    %v276 = vadd.f32 %v274, %v275
    %v277 = vrot.slane %v276, 2
    %v278 = vadd.f32 %v276, %v277
    %v279 = vrot.slane %v278, 1
    %v280 = vadd.f32 %v278, %v279
    %v281 = vsel %vm88, %v76, 0.0
    %v282 = vrot.slane %v281, 4
    %v283 = vadd.f32 %v281, %v282
    %v284 = vrot.slane %v283, 2
    %v285 = vadd.f32 %v283, %v284
    %v286 = vrot.slane %v285, 1
    %v287 = vadd.f32 %v285, %v286
    %v288 = vsel %vm88, %v77, 0.0
    %v289 = vrot.slane %v288, 4
    %v290 = vadd.f32 %v288, %v289
    %v291 = vrot.slane %v290, 2
    %v292 = vadd.f32 %v290, %v291
    %v293 = vrot.slane %v292, 1
    %v294 = vadd.f32 %v292, %v293
    %v295 = vsel %vm88, %v78, 0.0
    %v296 = vrot.slane %v295, 4
    %v297 = vadd.f32 %v295, %v296
    %v298 = vrot.slane %v297, 2
    %v299 = vadd.f32 %v297, %v298
    %v300 = vrot.slane %v299, 1
    %v301 = vadd.f32 %v299, %v300
    %v310 = vsel %vm153, %v259, %v252
    %v311 = vsel %vm155, %v266, %v310
    %v312 = vsel %vm157, %v273, %v311
    %v313 = vsel %vm159, %v280, %v312
    %v314 = vsel %vm161, %v287, %v313
    %v315 = vsel %vm163, %v294, %v314
    %v316 = vsel %vm165, %v301, %v315
    %v318 = vadd.f32 %v245, %v316
    %319 = vst [vmem:[#allocation10] sm:$0xff] %v318
    // Predicated region
    $region22: #{tpu_custom_call.1} parent=1 // pred_check
      _
    $region23: #{tpu_custom_call.1} parent=1 // pred_check_branch
      %321 = sbr.rel (0) target = $region25
    $region24: #{tpu_custom_call.1} parent=1 // pred_region
      %323 = vsyncadd [#allocation4], 0
      %s325 = sshll.u32 [#allocation7], 4
      %s326 = int_to_ptr.vmem [resolvable:$true] %s325
      %s327 = sshll.u32 %s2, 4
      %s328 = int_to_ptr.hbm [resolvable:$true] %s327
      %330 = dma.vmem_to_hbm [thread:$0]  %s326, 128, %s328, [#allocation4]
    $region25: #{tpu_custom_call.1} parent=1 // pred_fallthru
      _
    // Predicated region
    $region26: #{tpu_custom_call.1} parent=1 // pred_check
      _
    $region27: #{tpu_custom_call.1} parent=1 // pred_check_branch
      %332 = sbr.rel (0) target = $region29
    $region28: #{tpu_custom_call.1} parent=1 // pred_region
      %334 = vsyncadd [#allocation9], 0
      %s336 = sshll.u32 [#allocation8], 4
      %s337 = int_to_ptr.vmem [resolvable:$true] %s336
      %s338 = sshll.u32 %s3, 4
      %s339 = int_to_ptr.hbm [resolvable:$true] %s338
      %341 = dma.vmem_to_hbm [thread:$0]  %s337, 128, %s339, [#allocation9]
    $region29: #{tpu_custom_call.1} parent=1 // pred_fallthru
      _
    // Predicated region
    $region30: #{tpu_custom_call.1} parent=1 // pred_check
      _
    $region31: #{tpu_custom_call.1} parent=1 // pred_check_branch
      %343 = sbr.rel (0) target = $region33
    $region32: #{tpu_custom_call.1} parent=1 // pred_region
      %345 = vsyncadd [#allocation9], 0
      %s347 = sshll.u32 [#allocation10], 4
      %s348 = int_to_ptr.vmem [resolvable:$true] %s347
      %s349 = sshll.u32 %s4, 4
      %s350 = int_to_ptr.hbm [resolvable:$true] %s349
      %352 = dma.vmem_to_hbm [thread:$0]  %s348, 128, %s350, [#allocation9]
    $region33: #{tpu_custom_call.1} parent=1 // pred_fallthru
      _
    // Predicated region
    $region34: #{tpu_custom_call.1} parent=1 // pred_check
      _
    $region35: #{tpu_custom_call.1} parent=1 // pred_check_branch
      %354 = sbr.rel (0) target = $region37
    $region36: #{tpu_custom_call.1} parent=1 // pred_region
      %356 = dma.done [#allocation4], 128
    $region37: #{tpu_custom_call.1} parent=1 // pred_fallthru
      _
    // Predicated region
    $region38: #{tpu_custom_call.1} parent=1 // pred_check
      _
    $region39: #{tpu_custom_call.1} parent=1 // pred_check_branch
      %358 = sbr.rel (0) target = $region41
    $region40: #{tpu_custom_call.1} parent=1 // pred_region
      %360 = dma.done [#allocation9], 128
    $region41: #{tpu_custom_call.1} parent=1 // pred_fallthru
      _
    // Predicated region
    $region42: #{tpu_custom_call.1} parent=1 // pred_check
      _
    $region43: #{tpu_custom_call.1} parent=1 // pred_check_branch
      %362 = sbr.rel (0) target = $region45
    $region44: #{tpu_custom_call.1} parent=1 // pred_region
      %364 = dma.done [#allocation9], 128
    $region45: #{tpu_custom_call.1} parent=1 // pred_fallthru
      _
    %365 = vsyncpa [#allocation3], 1
    %366 = vsyncpa [#allocation6], 1
    %367 = vsyncpa [#allocation4], 1
    %368 = vsyncpa [#allocation9], 1

</llo_original>
